<compile_context>
chip_gen: v7x
topology: tpu7x:2x2x1
jax: 0.10.0
libtpu: 0.0.40
codegen_flags: <defaults>
</compile_context>

<pallas_src>
import jax
import jax.numpy as jnp
import numpy as np
from jax.experimental import pallas as pl
from jax.experimental.pallas import tpu as pltpu

N_ACTIONS = 9
N_STATE = 4
N_TILE = 20
STATE_LEN = 4

K = 8            # conv kernel size
STRIDE = 2       # conv stride
C_OUT = 8        # conv out channels
H_IN = 22        # (22 - 8)//2 + 1 = 8 -> 8*8*8 = 512 conv features (matches fc_q in-dim)
OH = OW = 8
CONV_FEAT = C_OUT * OH * OW            # 512
FC_IN = CONV_FEAT + N_TILE * N_STATE   # 592
IMG_FLAT = STATE_LEN * H_IN * H_IN     # 1936
K_PAD = 2048                           # 1936 pixels + 4 state, padded to lane multiple
A_PAD = 128                            # action dim padded 9 -> 128 (lane-dense stores)


def _round_up(n, m):
    return -(-n // m) * m


def _fused_fwd_kernel(x_ref, w_ref, b_ref, o_ref):
    # x:(TB,2048) bf16   w:(2048,128) bf16   b:(1,128) f32   o:(TB,128) f32
    o_ref[...] = (
        jnp.dot(x_ref[...], w_ref[...], preferred_element_type=jnp.float32)
        + b_ref[...]
    )


def _fuse_weights(params):
    """Fold /255, conv, channel-major flatten, state tiling and fc_q into one
    affine map (W_lin, b) acting on [flattened raw image | state features]."""
    conv_w = params["conv_w"].astype(jnp.float32) * (1.0 / 255.0)        # (8,4,8,8)
    wq = params["fcq_w"].astype(jnp.float32)                             # (9,592)
    wq_conv = wq[:, :CONV_FEAT].reshape(N_ACTIONS, C_OUT, OH, OW)        # (9,8,8,8)

    # T[a,c,kh,oh,kw,ow] = sum_co conv_w[co,c,kh,kw]/255 * fcq_w[a, co*64+oh*8+ow]
    t6 = jnp.einsum("ocij,aopq->acipjq", conv_w, wq_conv)                # (9,4,8,8,8,8)

    # One-hot map (kh, oh) -> h = 2*oh + kh (same for width); gather-free.
    s_np = np.zeros((K, OH, H_IN), np.float32)
    for kh in range(K):
        for oh in range(OH):
            s_np[kh, oh, STRIDE * oh + kh] = 1.0
    s = jnp.asarray(s_np)
    w_img = jnp.einsum("acipjq,iph,jqw->achw", t6, s, s)                 # (9,4,22,22)
    w_img = w_img.reshape(N_ACTIONS, IMG_FLAT).T                         # (1936,9)

    # tile(state, 20) @ fcq_w  ==  state @ (sum over the 20 weight copies).
    w_state = wq[:, CONV_FEAT:].reshape(N_ACTIONS, N_TILE, N_STATE).sum(axis=1).T  # (4,9)

    b_eff = params["fcq_b"].astype(jnp.float32) + jnp.einsum(
        "o,aopq->a", params["conv_b"].astype(jnp.float32), wq_conv)      # (9,)

    w_lin = jnp.zeros((K_PAD, A_PAD), jnp.float32)
    w_lin = w_lin.at[:IMG_FLAT, :N_ACTIONS].set(w_img)
    w_lin = w_lin.at[IMG_FLAT:IMG_FLAT + N_STATE, :N_ACTIONS].set(w_state)
    b_pad = jnp.zeros((1, A_PAD), jnp.float32).at[0, :N_ACTIONS].set(b_eff)
    return w_lin.astype(jnp.bfloat16), b_pad


def convnet_forward(x, state, params, *, batch_tile=512):
    B = x.shape[0]
    # >= 2 grid steps so dimension_semantics=("parallel",) can shard across
    # both v7x TensorCores; tile capped at batch_tile (2 MiB bf16 LHS block).
    TB = min(batch_tile, max(8, _round_up(-(-B // 2), 8)))
    B_pad = max(_round_up(B, TB), 2 * TB)

    # Cast to bf16 BEFORE any reshaping/padding: pixels 0..255 are exact in
    # bf16; state rounds at ~2^-9 relative (fine next to bf16 weights + f32 acc).
    x_bf = x.astype(jnp.bfloat16).reshape(B, IMG_FLAT)
    st_bf = state.reshape(B, N_STATE).astype(jnp.bfloat16)
    tail = jnp.zeros((B, K_PAD - IMG_FLAT - N_STATE), jnp.bfloat16)
    x_flat = jnp.concatenate([x_bf, st_bf, tail], axis=1)                # (B, 2048)
    x_flat = jnp.pad(x_flat, ((0, B_pad - B), (0, 0)))                   # (B_pad, 2048)

    w_lin, b_pad = _fuse_weights(params)

    cost = pl.CostEstimate(
        flops=2 * B_pad * K_PAD * A_PAD,
        transcendentals=0,
        bytes_accessed=B_pad * K_PAD * 2 + K_PAD * A_PAD * 2 + B_pad * A_PAD * 4)

    # TODO(synk): the reference forward calls self.fc_0 / self.fc_1 which are
    # never defined in __init__; fc_q's input dim (592) matches the concat
    # directly, so only conv + fc_q are implemented (and fused) here.
    q = pl.pallas_call(
        _fused_fwd_kernel,
        out_shape=jax.ShapeDtypeStruct((B_pad, A_PAD), jnp.float32),
        grid_spec=pltpu.PrefetchScalarGridSpec(
            num_scalar_prefetch=0,
            grid=(B_pad // TB,),
            in_specs=[
                pl.BlockSpec((TB, K_PAD), lambda i: (i, 0)),
                pl.BlockSpec((K_PAD, A_PAD), lambda i: (0, 0)),
                pl.BlockSpec((1, A_PAD), lambda i: (0, 0)),
            ],
            out_specs=pl.BlockSpec((TB, A_PAD), lambda i: (i, 0)),
        ),
        compiler_params=pltpu.CompilerParams(
            dimension_semantics=("parallel",)),
        cost_estimate=cost,
    )(x_flat, w_lin, b_pad)
    return q[:B, :N_ACTIONS]


def reference_forward(x, state, params):
    """Pure-JAX f32 reference mirroring the PyTorch semantics."""
    B = x.shape[0]
    xf = x.astype(jnp.float32) / 255.0
    conv = jax.lax.conv_general_dilated(
        xf, params["conv_w"], window_strides=(STRIDE, STRIDE),
        padding="VALID", dimension_numbers=("NCHW", "OIHW", "NCHW"))
    conv = conv + params["conv_b"].reshape(1, C_OUT, 1, 1)
    cf = conv.reshape(B, -1)
    st = jnp.tile(state.reshape(B, -1).astype(jnp.float32), (1, N_TILE))
    feat = jnp.concatenate([cf, st], axis=1)
    return feat @ params["fcq_w"].T + params["fcq_b"]


def init_params(key):
    k_conv, k_fc = jax.random.split(key)
    # Conv2d(4, 8, kernel_size=8): xavier_normal, bias = 0
    fan_in, fan_out = STATE_LEN * K * K, C_OUT * K * K
    conv_std = (2.0 / (fan_in + fan_out)) ** 0.5
    conv_w = conv_std * jax.random.normal(
        k_conv, (C_OUT, STATE_LEN, K, K), dtype=jnp.float32)
    conv_b = jnp.zeros((C_OUT,), dtype=jnp.float32)
    # Linear(592, 9): kaiming_normal, bias = 0
    fc_std = (2.0 / FC_IN) ** 0.5
    fcq_w = fc_std * jax.random.normal(k_fc, (N_ACTIONS, FC_IN), dtype=jnp.float32)
    fcq_b = jnp.zeros((N_ACTIONS,), dtype=jnp.float32)
    return {"conv_w": conv_w, "conv_b": conv_b, "fcq_w": fcq_w, "fcq_b": fcq_b}


if __name__ == "__main__":
    key = jax.random.PRNGKey(0)
    k_p, k_x, k_s = jax.random.split(key, 3)

    params = init_params(k_p)
    B = 2
    x = jax.random.uniform(k_x, (B, STATE_LEN, H_IN, H_IN),
                           minval=0.0, maxval=255.0, dtype=jnp.float32)
    state = jax.random.normal(k_s, (B, N_STATE), dtype=jnp.float32)

    fwd = jax.jit(convnet_forward)
    q = jax.block_until_ready(fwd(x, state, params))

    q_ref = jax.block_until_ready(reference_forward(x, state, params))
    assert q.shape == (B, N_ACTIONS), q.shape
    # bf16 operands (f32 accumulate) -> loosen tolerance vs. the f32 reference.
    assert jnp.allclose(q, q_ref, rtol=2e-2, atol=2e-2), (q, q_ref)

    print("KERNEL_OK")
</pallas_src>

<mosaic_0001>
module attributes {stable_mosaic.version = 11 : i64} {
  func.func @_fused_fwd_kernel(%arg0: i32, %arg1: memref<8x2048xbf16, #tpu.memory_space<vmem>>, %arg2: memref<2048x128xbf16, #tpu.memory_space<vmem>>, %arg3: memref<1x128xf32, #tpu.memory_space<vmem>>, %arg4: memref<8x128xf32, #tpu.memory_space<vmem>>) attributes {dimension_semantics = [#tpu.dimension_semantics<parallel>], iteration_bounds = array<i64: 2>, scalar_prefetch = 0 : i64, scratch_operands = 0 : i64, tpu.core_type = #tpu.core_type<tc>, window_params = [{transform_indices = @transform_0, window_bounds = array<i64: 8, 2048>}, {pipeline_mode = #tpu.pipeline_mode<synchronous>, transform_indices = @transform_1, window_bounds = array<i64: 2048, 128>}, {pipeline_mode = #tpu.pipeline_mode<synchronous>, transform_indices = @transform_2, window_bounds = array<i64: 1, 128>}, {transform_indices = @transform_3, window_bounds = array<i64: 8, 128>}]} {
    %c0 = arith.constant 0 : index
    %c0_0 = arith.constant 0 : index
    %0 = vector.load %arg1[%c0, %c0_0] : memref<8x2048xbf16, #tpu.memory_space<vmem>>, vector<8x2048xbf16>
    %c0_1 = arith.constant 0 : index
    %c0_2 = arith.constant 0 : index
    %1 = vector.load %arg2[%c0_1, %c0_2] : memref<2048x128xbf16, #tpu.memory_space<vmem>>, vector<2048x128xbf16>
    %cst = arith.constant dense<0.000000e+00> : vector<8x128xf32>
    %2 = tpu.matmul %0, %1, %cst {dimension_numbers = #tpu.dot_dimension_numbers<[1], [0], [0], [1], [0, 0, 1, 1], [], []>} : vector<8x2048xbf16>, vector<2048x128xbf16>, vector<8x128xf32> -> vector<8x128xf32>
    %c0_3 = arith.constant 0 : index
    %c0_4 = arith.constant 0 : index
    %3 = vector.load %arg3[%c0_3, %c0_4] : memref<1x128xf32, #tpu.memory_space<vmem>>, vector<1x128xf32>
    %4 = vector.broadcast %3 : vector<1x128xf32> to vector<8x128xf32>
    %5 = arith.addf %2, %4 : vector<8x128xf32>
    %c0_5 = arith.constant 0 : index
    %c0_6 = arith.constant 0 : index
    %6 = vector.load %arg4[%c0_5, %c0_6] : memref<8x128xf32, #tpu.memory_space<vmem>>, vector<8x128xf32>
    tpu.vector_store %arg4[%c0_5, %c0_6], %5 {strides = array<i32>} : memref<8x128xf32, #tpu.memory_space<vmem>>, vector<8x128xf32>,
    return
  }
  func.func @transform_0(%arg0: i32) -> (i32, i32) {
    %c0_i32 = arith.constant 0 : i32
    %c0_i32_0 = arith.constant 0 : i32
    return %arg0, %c0_i32 : i32, i32
  }
  func.func @transform_1(%arg0: i32) -> (i32, i32) {
    %c0_i32 = arith.constant 0 : i32
    %c0_i32_0 = arith.constant 0 : i32
    %c0_i32_1 = arith.constant 0 : i32
    return %c0_i32, %c0_i32_0 : i32, i32
  }
  func.func @transform_2(%arg0: i32) -> (i32, i32) {
    %c0_i32 = arith.constant 0 : i32
    %c0_i32_0 = arith.constant 0 : i32
    %c0_i32_1 = arith.constant 0 : i32
    return %c0_i32, %c0_i32_0 : i32, i32
  }
  func.func @transform_3(%arg0: i32) -> (i32, i32) {
    %c0_i32 = arith.constant 0 : i32
    %c0_i32_0 = arith.constant 0 : i32
    return %arg0, %c0_i32 : i32, i32
  }
}

</mosaic_0001>

<llo_original>
// kernel: convnet_forward.1
$region0: #{convnet_forward.1}
  #allocation0 [shape = 'u32[]', space=smem, size = 0x4, offset = 0x4, fixed_abs, tag = 'smem constant byte address 0x4 - core index']
  #allocation1 [shape = 'u32[144,128]{1,0:T(1,128)}', space=vmem, size = 0x12000, scoped, tag = 'internal scratch']
  %s0 = inlined_call_operand.vmem [shape: bf16[16,2048], index: 0, kind: input, shape index: {}]
  %s1 = inlined_call_operand.vmem [shape: bf16[2048,128], index: 1, kind: input, shape index: {}]
  %s2 = inlined_call_operand.vmem [shape: f32[1,128], index: 2, kind: input, shape index: {}]
  %s3 = inlined_call_operand.vmem [shape: f32[16,128], index: 3, kind: output, shape index: {}]
  %s4 = sld [smem:[#allocation0]]
  $region45: #{convnet_forward.1} parent=0
    _
  %s6 = ssub.s32 1, %s4
  %s7 = scalar_select 0, %s6, %s4
  loop: start=0, step=1, limit=4
  $region2: #{convnet_forward.1} parent=0 // loop_pre_header
    _
  $region3: #{convnet_forward.1} parent=0 // loop_header
    %s9 = sphi 0, %s13
    %p10 = scmp.ge.s32.totalorder %s9, 4
    %s19 = sphi 0, %s21
    %s22 = sphi 0, %s19
    %s23 = sphi 0, %s22
    %s39 = sphi 0, %s23
    %s43 = sphi 0, %s43
    %s45 = sphi 0, %s43
    %s46 = sphi 0, %s45
    %s60 = sphi 0, %s46
    %s64 = sphi 0, %s64
    %s66 = sphi 0, %s64
    %s67 = sphi 0, %s66
    %s81 = sphi 0, %s67
    %s87 = sphi 0, %s89
    %s90 = sphi 0, %s87
    %s91 = sphi 0, %s90
    %s107 = sphi 0, %s91
  $region4: #{convnet_forward.1} parent=0 // loop_header_branch
    %12 = sbr.rel (%p10) target = $region8
  $region5: #{convnet_forward.1} parent=0 // loop_body
    %s14 = ssub.s32 %s9, 1
    %s15 = ssub.s32 %s9, 2
    %s16 = sadd.s32 %s9, 1
    %s17 = ssub.s32 %s9, %s16
    %p18 = scmp.eq.s32.totalorder %s17, 0
    %s20 = sadd.s32 %s19, 1
    %s21 = scalar_select %p18, %s19, %s20
    %p24 = pneg %p18
    %p25 = scmp.eq.s32.totalorder %s9, 1
    %p26 = por %p24, %p25
    %p27 = scmp.ne.s32.totalorder %s19, %s22
    %p28 = scmp.eq.s32.totalorder %s9, 0
    %p29 = por %p27, %p28
    %p30 = scmp.ne.s32.totalorder %s19, %s22
    %p31 = scmp.eq.s32.totalorder %s14, 1
    %p32 = por %p30, %p31
    %p33 = scmp.ne.s32.totalorder %s22, %s23
    %p34 = scmp.eq.s32.totalorder %s14, 0
    %p35 = por %p33, %p34
    %p36 = scmp.ne.s32.totalorder %s22, %s23
    %p37 = scmp.eq.s32.totalorder %s15, 1
    %p38 = por %p36, %p37
    %p40 = scmp.ne.s32.totalorder %s23, %s39
    %p41 = scmp.eq.s32.totalorder %s15, 0
    %p42 = por %p40, %p41
    %s44 = sadd.s32 %s43, 1
    %p47 = scmp.eq.s32.totalorder %s9, 1
    %p48 = scmp.ne.s32.totalorder %s43, %s45
    %p49 = scmp.eq.s32.totalorder %s9, 0
    %p50 = por %p48, %p49
    %p51 = scmp.ne.s32.totalorder %s43, %s45
    %p52 = scmp.eq.s32.totalorder %s14, 1
    %p53 = por %p51, %p52
    %p54 = scmp.ne.s32.totalorder %s45, %s46
    %p55 = scmp.eq.s32.totalorder %s14, 0
    %p56 = por %p54, %p55
    %p57 = scmp.ne.s32.totalorder %s45, %s46
    %p58 = scmp.eq.s32.totalorder %s15, 1
    %p59 = por %p57, %p58
    %p61 = scmp.ne.s32.totalorder %s46, %s60
    %p62 = scmp.eq.s32.totalorder %s15, 0
    %p63 = por %p61, %p62
    %s65 = sadd.s32 %s64, 1
    %p68 = scmp.eq.s32.totalorder %s9, 1
    %p69 = scmp.ne.s32.totalorder %s64, %s66
    %p70 = scmp.eq.s32.totalorder %s9, 0
    %p71 = por %p69, %p70
    %p72 = scmp.ne.s32.totalorder %s64, %s66
    %p73 = scmp.eq.s32.totalorder %s14, 1
    %p74 = por %p72, %p73
    %p75 = scmp.ne.s32.totalorder %s66, %s67
    %p76 = scmp.eq.s32.totalorder %s14, 0
    %p77 = por %p75, %p76
    %p78 = scmp.ne.s32.totalorder %s66, %s67
    %p79 = scmp.eq.s32.totalorder %s15, 1
    %p80 = por %p78, %p79
    %p82 = scmp.ne.s32.totalorder %s67, %s81
    %p83 = scmp.eq.s32.totalorder %s15, 0
    %p84 = por %p82, %p83
    %s85 = ssub.s32 %s9, %s16
    %p86 = scmp.eq.s32.totalorder %s85, 0
    %s88 = sadd.s32 %s87, 1
    %s89 = scalar_select %p86, %s87, %s88
    %p92 = pneg %p86
    %p93 = scmp.eq.s32.totalorder %s9, 1
    %p94 = por %p92, %p93
    %p95 = scmp.ne.s32.totalorder %s87, %s90
    %p96 = scmp.eq.s32.totalorder %s9, 0
    %p97 = por %p95, %p96
    %p98 = scmp.ne.s32.totalorder %s87, %s90
    %p99 = scmp.eq.s32.totalorder %s14, 1
    %p100 = por %p98, %p99
    %p101 = scmp.ne.s32.totalorder %s90, %s91
    %p102 = scmp.eq.s32.totalorder %s14, 0
    %p103 = por %p101, %p102
    %p104 = scmp.ne.s32.totalorder %s90, %s91
    %p105 = scmp.eq.s32.totalorder %s15, 1
    %p106 = por %p104, %p105
    %p108 = scmp.ne.s32.totalorder %s91, %s107
    %p109 = scmp.eq.s32.totalorder %s15, 0
    %p110 = por %p108, %p109
    %p111 = scmp.le.s32.totalorder 1, %s9
    %p112 = scmp.lt.s32.totalorder %s9, 3
    %p113 = pnand %p111, %p112
    %p114 = pneg %p113
    // Predicated region
    $region9: #{convnet_forward.1} parent=5 // pred_check
      _
    $region10: #{convnet_forward.1} parent=5 // pred_check_branch
      %116 = sbr.rel (%p113) target = $region12
    $region11: #{convnet_forward.1} parent=5 // pred_region
      %s117 = ssub.s32 %s9, 1
      // Predicated region
      $region13: #{convnet_forward.1} parent=11 // pred_check
        %p118 = pneg %p56
      $region14: #{convnet_forward.1} parent=11 // pred_check_branch
        %120 = sbr.rel (%p118) target = $region16
      $region15: #{convnet_forward.1} parent=11 // pred_region
        _
      $region16: #{convnet_forward.1} parent=11 // pred_fallthru
        _
      // Predicated region
      $region17: #{convnet_forward.1} parent=11 // pred_check
        %p121 = pneg %p77
      $region18: #{convnet_forward.1} parent=11 // pred_check_branch
        %123 = sbr.rel (%p121) target = $region20
      $region19: #{convnet_forward.1} parent=11 // pred_region
        _
      $region20: #{convnet_forward.1} parent=11 // pred_fallthru
        _
    $region12: #{convnet_forward.1} parent=5 // pred_fallthru
      _
    %p124 = scmp.lt.s32.totalorder %s9, 2
    // Predicated region
    $region21: #{convnet_forward.1} parent=5 // pred_check
      %p125 = pneg %p124
    $region22: #{convnet_forward.1} parent=5 // pred_check_branch
      %127 = sbr.rel (%p125) target = $region24
    $region23: #{convnet_forward.1} parent=5 // pred_region
      // Predicated region
      $region25: #{convnet_forward.1} parent=23 // pred_check
        %p128 = pneg %p29
      $region26: #{convnet_forward.1} parent=23 // pred_check_branch
        %130 = sbr.rel (%p128) target = $region28
      $region27: #{convnet_forward.1} parent=23 // pred_region
        %p131 = scmp.lt.s32.totalorder %s9, 1
        %s132 = scalar_select %p131, %s9, 1
        %s133 = smul.addr %s132, 16
        %s134 = smul.addr %s133, 4
        %s135 = scalar_lea.vmem %s0, %s134
      $region28: #{convnet_forward.1} parent=23 // pred_fallthru
        _
    $region24: #{convnet_forward.1} parent=5 // pred_fallthru
      _
    %p136 = scmp.le.s32.totalorder 1, %s9
    %p137 = scmp.lt.s32.totalorder %s9, 3
    %p138 = pnand %p136, %p137
    %p139 = pneg %p138
    // Predicated region
    $region29: #{convnet_forward.1} parent=5 // pred_check
      _
    $region30: #{convnet_forward.1} parent=5 // pred_check_branch
      %141 = sbr.rel (%p138) target = $region32
    $region31: #{convnet_forward.1} parent=5 // pred_region
      %s142 = ssub.s32 %s9, 1
      %p143 = scmp.lt.s32.totalorder %s14, 1
      %s144 = scalar_select %p143, %s14, 1
      %s145 = smul.addr %s144, 16
      %s146 = smul.addr %s145, 4
      %s147 = scalar_lea.vmem %s0, %s146
      %p148 = pneg %p35
      %p149 = pneg %p32
      %p150 = pneg %p56
      %p151 = pneg %p53
      %p152 = pneg %p77
      %p153 = pneg %p74
      %p154 = pneg %p103
      %p155 = pneg %p100
      %p156 = scmp.lt.s32.totalorder %s14, 1
      %s157 = scalar_select %p156, %s14, 1
      %s158 = smul.addr %s157, 8
      %s159 = scalar_lea.vmem %s3, %s158
      %p160 = scmp.lt.s32.totalorder %s14, 1
      %s161 = scalar_select %p160, %s14, 1
      %s162 = smul.addr %s161, 16
      %s163 = smul.addr %s162, 4
      %s164 = scalar_lea.vmem %s0, %s163
      %p165 = scmp.lt.s32.totalorder %s14, 1
      %s166 = scalar_select %p165, %s14, 1
      %s167 = smul.addr %s166, 8
      %s168 = scalar_lea.vmem %s3, %s167
      %v170 = vld [vmem:[%s164] sm:$0xff]
      %v171 = vld [vmem:[%s164 + $0x8] sm:$0xff]
      %v172 = vld [vmem:[%s164 + $0x10] sm:$0xff]
      %v173 = vld [vmem:[%s164 + $0x18] sm:$0xff]
      %v174 = vld [vmem:[%s164 + $0x20] sm:$0xff]
      %v175 = vld [vmem:[%s164 + $0x28] sm:$0xff]
      %v176 = vld [vmem:[%s164 + $0x30] sm:$0xff]
      %v177 = vld [vmem:[%s164 + $0x38] sm:$0xff]
      %v178 = vld [vmem:[%s1] sm:$0xf]
      %v179 = vld [vmem:[%s1 + $0x4] sm:$0xf]
      %v180 = vld [vmem:[%s1 + $0x8] sm:$0xf]
      %v181 = vld [vmem:[%s1 + $0xc] sm:$0xf]
      %v182 = vld [vmem:[%s1 + $0x10] sm:$0xf]
      %v183 = vld [vmem:[%s1 + $0x14] sm:$0xf]
      %v184 = vld [vmem:[%s1 + $0x18] sm:$0xf]
      %v185 = vld [vmem:[%s1 + $0x1c] sm:$0xf]
      %v186 = vld [vmem:[%s1 + $0x20] sm:$0xf]
      %v187 = vld [vmem:[%s1 + $0x24] sm:$0xf]
      %v188 = vld [vmem:[%s1 + $0x28] sm:$0xf]
      %v189 = vld [vmem:[%s1 + $0x2c] sm:$0xf]
      %v190 = vld [vmem:[%s1 + $0x30] sm:$0xf]
      %v191 = vld [vmem:[%s1 + $0x34] sm:$0xf]
      %v192 = vld [vmem:[%s1 + $0x38] sm:$0xf]
      %v193 = vld [vmem:[%s1 + $0x3c] sm:$0xf]
      %v194 = vld [vmem:[%s1 + $0x40] sm:$0xf]
      %v195 = vld [vmem:[%s1 + $0x44] sm:$0xf]
      %v196 = vld [vmem:[%s1 + $0x48] sm:$0xf]
      %v197 = vld [vmem:[%s1 + $0x4c] sm:$0xf]
      %v198 = vld [vmem:[%s1 + $0x50] sm:$0xf]
      %v199 = vld [vmem:[%s1 + $0x54] sm:$0xf]
      %v200 = vld [vmem:[%s1 + $0x58] sm:$0xf]
      %v201 = vld [vmem:[%s1 + $0x5c] sm:$0xf]
      %v202 = vld [vmem:[%s1 + $0x60] sm:$0xf]
      %v203 = vld [vmem:[%s1 + $0x64] sm:$0xf]
      %v204 = vld [vmem:[%s1 + $0x68] sm:$0xf]
      %v205 = vld [vmem:[%s1 + $0x6c] sm:$0xf]
      %v206 = vld [vmem:[%s1 + $0x70] sm:$0xf]
      %v207 = vld [vmem:[%s1 + $0x74] sm:$0xf]
      %v208 = vld [vmem:[%s1 + $0x78] sm:$0xf]
      %v209 = vld [vmem:[%s1 + $0x7c] sm:$0xf]
      %v210 = vld [vmem:[%s1 + $0x80] sm:$0xf]
      %v211 = vld [vmem:[%s1 + $0x84] sm:$0xf]
      %v212 = vld [vmem:[%s1 + $0x88] sm:$0xf]
      %v213 = vld [vmem:[%s1 + $0x8c] sm:$0xf]
      %v214 = vld [vmem:[%s1 + $0x90] sm:$0xf]
      %v215 = vld [vmem:[%s1 + $0x94] sm:$0xf]
      %v216 = vld [vmem:[%s1 + $0x98] sm:$0xf]
      %v217 = vld [vmem:[%s1 + $0x9c] sm:$0xf]
      %v218 = vld [vmem:[%s1 + $0xa0] sm:$0xf]
      %v219 = vld [vmem:[%s1 + $0xa4] sm:$0xf]
      %v220 = vld [vmem:[%s1 + $0xa8] sm:$0xf]
      %v221 = vld [vmem:[%s1 + $0xac] sm:$0xf]
      %v222 = vld [vmem:[%s1 + $0xb0] sm:$0xf]
      %v223 = vld [vmem:[%s1 + $0xb4] sm:$0xf]
      %v224 = vld [vmem:[%s1 + $0xb8] sm:$0xf]
      %v225 = vld [vmem:[%s1 + $0xbc] sm:$0xf]
      %v226 = vld [vmem:[%s1 + $0xc0] sm:$0xf]
      %v227 = vld [vmem:[%s1 + $0xc4] sm:$0xf]
      %v228 = vld [vmem:[%s1 + $0xc8] sm:$0xf]
      %v229 = vld [vmem:[%s1 + $0xcc] sm:$0xf]
      %v230 = vld [vmem:[%s1 + $0xd0] sm:$0xf]
      %v231 = vld [vmem:[%s1 + $0xd4] sm:$0xf]
      %v232 = vld [vmem:[%s1 + $0xd8] sm:$0xf]
      %v233 = vld [vmem:[%s1 + $0xdc] sm:$0xf]
      %v234 = vld [vmem:[%s1 + $0xe0] sm:$0xf]
      %v235 = vld [vmem:[%s1 + $0xe4] sm:$0xf]
      %v236 = vld [vmem:[%s1 + $0xe8] sm:$0xf]
      %v237 = vld [vmem:[%s1 + $0xec] sm:$0xf]
      %v238 = vld [vmem:[%s1 + $0xf0] sm:$0xf]
      %v239 = vld [vmem:[%s1 + $0xf4] sm:$0xf]
      %v240 = vld [vmem:[%s1 + $0xf8] sm:$0xf]
      %v241 = vld [vmem:[%s1 + $0xfc] sm:$0xf]
      %v242 = vld [vmem:[%s1 + $0x100] sm:$0xf]
      %v243 = vld [vmem:[%s1 + $0x104] sm:$0xf]
      %v244 = vld [vmem:[%s1 + $0x108] sm:$0xf]
      %v245 = vld [vmem:[%s1 + $0x10c] sm:$0xf]
      %v246 = vld [vmem:[%s1 + $0x110] sm:$0xf]
      %v247 = vld [vmem:[%s1 + $0x114] sm:$0xf]
      %v248 = vld [vmem:[%s1 + $0x118] sm:$0xf]
      %v249 = vld [vmem:[%s1 + $0x11c] sm:$0xf]
      %v250 = vld [vmem:[%s1 + $0x120] sm:$0xf]
      %v251 = vld [vmem:[%s1 + $0x124] sm:$0xf]
      %v252 = vld [vmem:[%s1 + $0x128] sm:$0xf]
      %v253 = vld [vmem:[%s1 + $0x12c] sm:$0xf]
      %v254 = vld [vmem:[%s1 + $0x130] sm:$0xf]
      %v255 = vld [vmem:[%s1 + $0x134] sm:$0xf]
      %v256 = vld [vmem:[%s1 + $0x138] sm:$0xf]
      %v257 = vld [vmem:[%s1 + $0x13c] sm:$0xf]
      %v258 = vld [vmem:[%s1 + $0x140] sm:$0xf]
      %v259 = vld [vmem:[%s1 + $0x144] sm:$0xf]
      %v260 = vld [vmem:[%s1 + $0x148] sm:$0xf]
      %v261 = vld [vmem:[%s1 + $0x14c] sm:$0xf]
      %v262 = vld [vmem:[%s1 + $0x150] sm:$0xf]
      %v263 = vld [vmem:[%s1 + $0x154] sm:$0xf]
      %v264 = vld [vmem:[%s1 + $0x158] sm:$0xf]
      %v265 = vld [vmem:[%s1 + $0x15c] sm:$0xf]
      %v266 = vld [vmem:[%s1 + $0x160] sm:$0xf]
      %v267 = vld [vmem:[%s1 + $0x164] sm:$0xf]
      %v268 = vld [vmem:[%s1 + $0x168] sm:$0xf]
      %v269 = vld [vmem:[%s1 + $0x16c] sm:$0xf]
      %v270 = vld [vmem:[%s1 + $0x170] sm:$0xf]
      %v271 = vld [vmem:[%s1 + $0x174] sm:$0xf]
      %v272 = vld [vmem:[%s1 + $0x178] sm:$0xf]
      %v273 = vld [vmem:[%s1 + $0x17c] sm:$0xf]
      %v274 = vld [vmem:[%s1 + $0x180] sm:$0xf]
      %v275 = vld [vmem:[%s1 + $0x184] sm:$0xf]
      %v276 = vld [vmem:[%s1 + $0x188] sm:$0xf]
      %v277 = vld [vmem:[%s1 + $0x18c] sm:$0xf]
      %v278 = vld [vmem:[%s1 + $0x190] sm:$0xf]
      %v279 = vld [vmem:[%s1 + $0x194] sm:$0xf]
      %v280 = vld [vmem:[%s1 + $0x198] sm:$0xf]
      %v281 = vld [vmem:[%s1 + $0x19c] sm:$0xf]
      %v282 = vld [vmem:[%s1 + $0x1a0] sm:$0xf]
      %v283 = vld [vmem:[%s1 + $0x1a4] sm:$0xf]
      %v284 = vld [vmem:[%s1 + $0x1a8] sm:$0xf]
      %v285 = vld [vmem:[%s1 + $0x1ac] sm:$0xf]
      %v286 = vld [vmem:[%s1 + $0x1b0] sm:$0xf]
      %v287 = vld [vmem:[%s1 + $0x1b4] sm:$0xf]
      %v288 = vld [vmem:[%s1 + $0x1b8] sm:$0xf]
      %v289 = vld [vmem:[%s1 + $0x1bc] sm:$0xf]
      %v290 = vld [vmem:[%s1 + $0x1c0] sm:$0xf]
      %v291 = vld [vmem:[%s1 + $0x1c4] sm:$0xf]
      %v292 = vld [vmem:[%s1 + $0x1c8] sm:$0xf]
      %v293 = vld [vmem:[%s1 + $0x1cc] sm:$0xf]
      %v294 = vld [vmem:[%s1 + $0x1d0] sm:$0xf]
      %v295 = vld [vmem:[%s1 + $0x1d4] sm:$0xf]
      %v296 = vld [vmem:[%s1 + $0x1d8] sm:$0xf]
      %v297 = vld [vmem:[%s1 + $0x1dc] sm:$0xf]
      %v298 = vld [vmem:[%s1 + $0x1e0] sm:$0xf]
      %v299 = vld [vmem:[%s1 + $0x1e4] sm:$0xf]
      %v300 = vld [vmem:[%s1 + $0x1e8] sm:$0xf]
      %v301 = vld [vmem:[%s1 + $0x1ec] sm:$0xf]
      %v302 = vld [vmem:[%s1 + $0x1f0] sm:$0xf]
      %v303 = vld [vmem:[%s1 + $0x1f4] sm:$0xf]
      %v304 = vld [vmem:[%s1 + $0x1f8] sm:$0xf]
      %v305 = vld [vmem:[%s1 + $0x1fc] sm:$0xf]
      %v306 = vld [vmem:[%s1 + $0x200] sm:$0xf]
      %v307 = vld [vmem:[%s1 + $0x204] sm:$0xf]
      %v308 = vld [vmem:[%s1 + $0x208] sm:$0xf]
      %v309 = vld [vmem:[%s1 + $0x20c] sm:$0xf]
      %v310 = vld [vmem:[%s1 + $0x210] sm:$0xf]
      %v311 = vld [vmem:[%s1 + $0x214] sm:$0xf]
      %v312 = vld [vmem:[%s1 + $0x218] sm:$0xf]
      %v313 = vld [vmem:[%s1 + $0x21c] sm:$0xf]
      %v314 = vld [vmem:[%s1 + $0x220] sm:$0xf]
      %v315 = vld [vmem:[%s1 + $0x224] sm:$0xf]
      %v316 = vld [vmem:[%s1 + $0x228] sm:$0xf]
      %v317 = vld [vmem:[%s1 + $0x22c] sm:$0xf]
      %v318 = vld [vmem:[%s1 + $0x230] sm:$0xf]
      %v319 = vld [vmem:[%s1 + $0x234] sm:$0xf]
      %v320 = vld [vmem:[%s1 + $0x238] sm:$0xf]
      %v321 = vld [vmem:[%s1 + $0x23c] sm:$0xf]
      %v322 = vld [vmem:[%s1 + $0x240] sm:$0xf]
      %v323 = vld [vmem:[%s1 + $0x244] sm:$0xf]
      %v324 = vld [vmem:[%s1 + $0x248] sm:$0xf]
      %v325 = vld [vmem:[%s1 + $0x24c] sm:$0xf]
      %v326 = vld [vmem:[%s1 + $0x250] sm:$0xf]
      %v327 = vld [vmem:[%s1 + $0x254] sm:$0xf]
      %v328 = vld [vmem:[%s1 + $0x258] sm:$0xf]
      %v329 = vld [vmem:[%s1 + $0x25c] sm:$0xf]
      %v330 = vld [vmem:[%s1 + $0x260] sm:$0xf]
      %v331 = vld [vmem:[%s1 + $0x264] sm:$0xf]
      %v332 = vld [vmem:[%s1 + $0x268] sm:$0xf]
      %v333 = vld [vmem:[%s1 + $0x26c] sm:$0xf]
      %v334 = vld [vmem:[%s1 + $0x270] sm:$0xf]
      %v335 = vld [vmem:[%s1 + $0x274] sm:$0xf]
      %v336 = vld [vmem:[%s1 + $0x278] sm:$0xf]
      %v337 = vld [vmem:[%s1 + $0x27c] sm:$0xf]
      %v338 = vld [vmem:[%s1 + $0x280] sm:$0xf]
      %v339 = vld [vmem:[%s1 + $0x284] sm:$0xf]
      %v340 = vld [vmem:[%s1 + $0x288] sm:$0xf]
      %v341 = vld [vmem:[%s1 + $0x28c] sm:$0xf]
      %v342 = vld [vmem:[%s1 + $0x290] sm:$0xf]
      %v343 = vld [vmem:[%s1 + $0x294] sm:$0xf]
      %v344 = vld [vmem:[%s1 + $0x298] sm:$0xf]
      %v345 = vld [vmem:[%s1 + $0x29c] sm:$0xf]
      %v346 = vld [vmem:[%s1 + $0x2a0] sm:$0xf]
      %v347 = vld [vmem:[%s1 + $0x2a4] sm:$0xf]
      %v348 = vld [vmem:[%s1 + $0x2a8] sm:$0xf]
      %v349 = vld [vmem:[%s1 + $0x2ac] sm:$0xf]
      %v350 = vld [vmem:[%s1 + $0x2b0] sm:$0xf]
      %v351 = vld [vmem:[%s1 + $0x2b4] sm:$0xf]
      %v352 = vld [vmem:[%s1 + $0x2b8] sm:$0xf]
      %v353 = vld [vmem:[%s1 + $0x2bc] sm:$0xf]
      %v354 = vld [vmem:[%s1 + $0x2c0] sm:$0xf]
      %v355 = vld [vmem:[%s1 + $0x2c4] sm:$0xf]
      %v356 = vld [vmem:[%s1 + $0x2c8] sm:$0xf]
      %v357 = vld [vmem:[%s1 + $0x2cc] sm:$0xf]
      %v358 = vld [vmem:[%s1 + $0x2d0] sm:$0xf]
      %v359 = vld [vmem:[%s1 + $0x2d4] sm:$0xf]
      %v360 = vld [vmem:[%s1 + $0x2d8] sm:$0xf]
      %v361 = vld [vmem:[%s1 + $0x2dc] sm:$0xf]
      %v362 = vld [vmem:[%s1 + $0x2e0] sm:$0xf]
      %v363 = vld [vmem:[%s1 + $0x2e4] sm:$0xf]
      %v364 = vld [vmem:[%s1 + $0x2e8] sm:$0xf]
      %v365 = vld [vmem:[%s1 + $0x2ec] sm:$0xf]
      %v366 = vld [vmem:[%s1 + $0x2f0] sm:$0xf]
      %v367 = vld [vmem:[%s1 + $0x2f4] sm:$0xf]
      %v368 = vld [vmem:[%s1 + $0x2f8] sm:$0xf]
      %v369 = vld [vmem:[%s1 + $0x2fc] sm:$0xf]
      %v370 = vld [vmem:[%s1 + $0x300] sm:$0xf]
      %v371 = vld [vmem:[%s1 + $0x304] sm:$0xf]
      %v372 = vld [vmem:[%s1 + $0x308] sm:$0xf]
      %v373 = vld [vmem:[%s1 + $0x30c] sm:$0xf]
      %v374 = vld [vmem:[%s1 + $0x310] sm:$0xf]
      %v375 = vld [vmem:[%s1 + $0x314] sm:$0xf]
      %v376 = vld [vmem:[%s1 + $0x318] sm:$0xf]
      %v377 = vld [vmem:[%s1 + $0x31c] sm:$0xf]
      %v378 = vld [vmem:[%s1 + $0x320] sm:$0xf]
      %v379 = vld [vmem:[%s1 + $0x324] sm:$0xf]
      %v380 = vld [vmem:[%s1 + $0x328] sm:$0xf]
      %v381 = vld [vmem:[%s1 + $0x32c] sm:$0xf]
      %v382 = vld [vmem:[%s1 + $0x330] sm:$0xf]
      %v383 = vld [vmem:[%s1 + $0x334] sm:$0xf]
      %v384 = vld [vmem:[%s1 + $0x338] sm:$0xf]
      %v385 = vld [vmem:[%s1 + $0x33c] sm:$0xf]
      %v386 = vld [vmem:[%s1 + $0x340] sm:$0xf]
      %v387 = vld [vmem:[%s1 + $0x344] sm:$0xf]
      %v388 = vld [vmem:[%s1 + $0x348] sm:$0xf]
      %v389 = vld [vmem:[%s1 + $0x34c] sm:$0xf]
      %v390 = vld [vmem:[%s1 + $0x350] sm:$0xf]
      %v391 = vld [vmem:[%s1 + $0x354] sm:$0xf]
      %v392 = vld [vmem:[%s1 + $0x358] sm:$0xf]
      %v393 = vld [vmem:[%s1 + $0x35c] sm:$0xf]
      %v394 = vld [vmem:[%s1 + $0x360] sm:$0xf]
      %v395 = vld [vmem:[%s1 + $0x364] sm:$0xf]
      %v396 = vld [vmem:[%s1 + $0x368] sm:$0xf]
      %v397 = vld [vmem:[%s1 + $0x36c] sm:$0xf]
      %v398 = vld [vmem:[%s1 + $0x370] sm:$0xf]
      %v399 = vld [vmem:[%s1 + $0x374] sm:$0xf]
      %v400 = vld [vmem:[%s1 + $0x378] sm:$0xf]
      %v401 = vld [vmem:[%s1 + $0x37c] sm:$0xf]
      %v402 = vld [vmem:[%s1 + $0x380] sm:$0xf]
      %v403 = vld [vmem:[%s1 + $0x384] sm:$0xf]
      %v404 = vld [vmem:[%s1 + $0x388] sm:$0xf]
      %v405 = vld [vmem:[%s1 + $0x38c] sm:$0xf]
      %v406 = vld [vmem:[%s1 + $0x390] sm:$0xf]
      %v407 = vld [vmem:[%s1 + $0x394] sm:$0xf]
      %v408 = vld [vmem:[%s1 + $0x398] sm:$0xf]
      %v409 = vld [vmem:[%s1 + $0x39c] sm:$0xf]
      %v410 = vld [vmem:[%s1 + $0x3a0] sm:$0xf]
      %v411 = vld [vmem:[%s1 + $0x3a4] sm:$0xf]
      %v412 = vld [vmem:[%s1 + $0x3a8] sm:$0xf]
      %v413 = vld [vmem:[%s1 + $0x3ac] sm:$0xf]
      %v414 = vld [vmem:[%s1 + $0x3b0] sm:$0xf]
      %v415 = vld [vmem:[%s1 + $0x3b4] sm:$0xf]
      %v416 = vld [vmem:[%s1 + $0x3b8] sm:$0xf]
      %v417 = vld [vmem:[%s1 + $0x3bc] sm:$0xf]
      %v418 = vld [vmem:[%s1 + $0x3c0] sm:$0xf]
      %v419 = vld [vmem:[%s1 + $0x3c4] sm:$0xf]
      %v420 = vld [vmem:[%s1 + $0x3c8] sm:$0xf]
      %v421 = vld [vmem:[%s1 + $0x3cc] sm:$0xf]
      %v422 = vld [vmem:[%s1 + $0x3d0] sm:$0xf]
      %v423 = vld [vmem:[%s1 + $0x3d4] sm:$0xf]
      %v424 = vld [vmem:[%s1 + $0x3d8] sm:$0xf]
      %v425 = vld [vmem:[%s1 + $0x3dc] sm:$0xf]
      %v426 = vld [vmem:[%s1 + $0x3e0] sm:$0xf]
      %v427 = vld [vmem:[%s1 + $0x3e4] sm:$0xf]
      %v428 = vld [vmem:[%s1 + $0x3e8] sm:$0xf]
      %v429 = vld [vmem:[%s1 + $0x3ec] sm:$0xf]
      %v430 = vld [vmem:[%s1 + $0x3f0] sm:$0xf]
      %v431 = vld [vmem:[%s1 + $0x3f4] sm:$0xf]
      %v432 = vld [vmem:[%s1 + $0x3f8] sm:$0xf]
      %v433 = vld [vmem:[%s1 + $0x3fc] sm:$0xf]
      %v434 = vld [vmem:[%s2] sm:$0x1]
      %v436 = vlaneseq
      %v437 = vshrl.u32 %v436, 7
      %v438 = vsub.s32 0, %v437
      %v439 = vrot.slane %v434, %v438
      %v449 = vunpack.c.l.b16 %v170
      %v450 = vunpack.c.h.b16 %v170
      %v451 = vunpack.c.l.b16 %v171
      %v452 = vunpack.c.h.b16 %v171
      %v453 = vunpack.c.l.b16 %v172
      %v454 = vunpack.c.h.b16 %v172
      %v455 = vunpack.c.l.b16 %v173
      %v456 = vunpack.c.h.b16 %v173
      %v457 = vunpack.c.l.b16 %v174
      %v458 = vunpack.c.h.b16 %v174
      %v459 = vunpack.c.l.b16 %v175
      %v460 = vunpack.c.h.b16 %v175
      %v461 = vunpack.c.l.b16 %v176
      %v462 = vunpack.c.h.b16 %v176
      %v463 = vunpack.c.l.b16 %v177
      %v464 = vunpack.c.h.b16 %v177
      %v465 = vpack.c.b16 %v449, %v449
      %v466 = vpack.c.b16 %v450, %v450
      %v467 = vpack.c.b16 %v451, %v451
      %v468 = vpack.c.b16 %v452, %v452
      %v469 = vpack.c.b16 %v453, %v453
      %v470 = vpack.c.b16 %v454, %v454
      %v471 = vpack.c.b16 %v455, %v455
      %v472 = vpack.c.b16 %v456, %v456
      %v473 = vpack.c.b16 %v457, %v457
      %v474 = vpack.c.b16 %v458, %v458
      %v475 = vpack.c.b16 %v459, %v459
      %v476 = vpack.c.b16 %v460, %v460
      %v477 = vpack.c.b16 %v461, %v461
      %v478 = vpack.c.b16 %v462, %v462
      %v479 = vpack.c.b16 %v463, %v463
      %v480 = vpack.c.b16 %v464, %v464
      %v753 = vunpack.c.l.b16 %v178
      %v754 = vunpack.c.l.b16 %v179
      %v755 = vunpack.c.l.b16 %v180
      %v756 = vunpack.c.l.b16 %v181
      %v757 = vunpack.c.l.b16 %v182
      %v758 = vunpack.c.l.b16 %v183
      %v759 = vunpack.c.l.b16 %v184
      %v760 = vunpack.c.l.b16 %v185
      %v761 = vunpack.c.l.b16 %v186
      %v762 = vunpack.c.l.b16 %v187
      %v763 = vunpack.c.l.b16 %v188
      %v764 = vunpack.c.l.b16 %v189
      %v765 = vunpack.c.l.b16 %v190
      %v766 = vunpack.c.l.b16 %v191
      %v767 = vunpack.c.l.b16 %v192
      %v768 = vunpack.c.l.b16 %v193
      %v769 = vunpack.c.l.b16 %v194
      %v770 = vunpack.c.l.b16 %v195
      %v771 = vunpack.c.l.b16 %v196
      %v772 = vunpack.c.l.b16 %v197
      %v773 = vunpack.c.l.b16 %v198
      %v774 = vunpack.c.l.b16 %v199
      %v775 = vunpack.c.l.b16 %v200
      %v776 = vunpack.c.l.b16 %v201
      %v777 = vunpack.c.l.b16 %v202
      %v778 = vunpack.c.l.b16 %v203
      %v779 = vunpack.c.l.b16 %v204
      %v780 = vunpack.c.l.b16 %v205
      %v781 = vunpack.c.l.b16 %v206
      %v782 = vunpack.c.l.b16 %v207
      %v783 = vunpack.c.l.b16 %v208
      %v784 = vunpack.c.l.b16 %v209
      %v785 = vunpack.c.l.b16 %v210
      %v786 = vunpack.c.l.b16 %v211
      %v787 = vunpack.c.l.b16 %v212
      %v788 = vunpack.c.l.b16 %v213
      %v789 = vunpack.c.l.b16 %v214
      %v790 = vunpack.c.l.b16 %v215
      %v791 = vunpack.c.l.b16 %v216
      %v792 = vunpack.c.l.b16 %v217
      %v793 = vunpack.c.l.b16 %v218
      %v794 = vunpack.c.l.b16 %v219
      %v795 = vunpack.c.l.b16 %v220
      %v796 = vunpack.c.l.b16 %v221
      %v797 = vunpack.c.l.b16 %v222
      %v798 = vunpack.c.l.b16 %v223
      %v799 = vunpack.c.l.b16 %v224
      %v800 = vunpack.c.l.b16 %v225
      %v801 = vunpack.c.l.b16 %v226
      %v802 = vunpack.c.l.b16 %v227
      %v803 = vunpack.c.l.b16 %v228
      %v804 = vunpack.c.l.b16 %v229
      %v805 = vunpack.c.l.b16 %v230
      %v806 = vunpack.c.l.b16 %v231
      %v807 = vunpack.c.l.b16 %v232
      %v808 = vunpack.c.l.b16 %v233
      %v809 = vunpack.c.l.b16 %v234
      %v810 = vunpack.c.l.b16 %v235
      %v811 = vunpack.c.l.b16 %v236
      %v812 = vunpack.c.l.b16 %v237
      %v813 = vunpack.c.l.b16 %v238
      %v814 = vunpack.c.l.b16 %v239
      %v815 = vunpack.c.l.b16 %v240
      %v816 = vunpack.c.l.b16 %v241
      %v817 = vunpack.c.l.b16 %v242
      %v818 = vunpack.c.l.b16 %v243
      %v819 = vunpack.c.l.b16 %v244
      %v820 = vunpack.c.l.b16 %v245
      %v821 = vunpack.c.l.b16 %v246
      %v822 = vunpack.c.l.b16 %v247
      %v823 = vunpack.c.l.b16 %v248
      %v824 = vunpack.c.l.b16 %v249
      %v825 = vunpack.c.l.b16 %v250
      %v826 = vunpack.c.l.b16 %v251
      %v827 = vunpack.c.l.b16 %v252
      %v828 = vunpack.c.l.b16 %v253
      %v829 = vunpack.c.l.b16 %v254
      %v830 = vunpack.c.l.b16 %v255
      %v831 = vunpack.c.l.b16 %v256
      %v832 = vunpack.c.l.b16 %v257
      %v833 = vunpack.c.l.b16 %v258
      %v834 = vunpack.c.l.b16 %v259
      %v835 = vunpack.c.l.b16 %v260
      %v836 = vunpack.c.l.b16 %v261
      %v837 = vunpack.c.l.b16 %v262
      %v838 = vunpack.c.l.b16 %v263
      %v839 = vunpack.c.l.b16 %v264
      %v840 = vunpack.c.l.b16 %v265
      %v841 = vunpack.c.l.b16 %v266
      %v842 = vunpack.c.l.b16 %v267
      %v843 = vunpack.c.l.b16 %v268
      %v844 = vunpack.c.l.b16 %v269
      %v845 = vunpack.c.l.b16 %v270
      %v846 = vunpack.c.l.b16 %v271
      %v847 = vunpack.c.l.b16 %v272
      %v848 = vunpack.c.l.b16 %v273
      %v849 = vunpack.c.l.b16 %v274
      %v850 = vunpack.c.l.b16 %v275
      %v851 = vunpack.c.l.b16 %v276
      %v852 = vunpack.c.l.b16 %v277
      %v853 = vunpack.c.l.b16 %v278
      %v854 = vunpack.c.l.b16 %v279
      %v855 = vunpack.c.l.b16 %v280
      %v856 = vunpack.c.l.b16 %v281
      %v857 = vunpack.c.l.b16 %v282
      %v858 = vunpack.c.l.b16 %v283
      %v859 = vunpack.c.l.b16 %v284
      %v860 = vunpack.c.l.b16 %v285
      %v861 = vunpack.c.l.b16 %v286
      %v862 = vunpack.c.l.b16 %v287
      %v863 = vunpack.c.l.b16 %v288
      %v864 = vunpack.c.l.b16 %v289
      %v865 = vunpack.c.l.b16 %v290
      %v866 = vunpack.c.l.b16 %v291
      %v867 = vunpack.c.l.b16 %v292
      %v868 = vunpack.c.l.b16 %v293
      %v869 = vunpack.c.l.b16 %v294
      %v870 = vunpack.c.l.b16 %v295
      %v871 = vunpack.c.l.b16 %v296
      %v872 = vunpack.c.l.b16 %v297
      %v873 = vunpack.c.l.b16 %v298
      %v874 = vunpack.c.l.b16 %v299
      %v875 = vunpack.c.l.b16 %v300
      %v876 = vunpack.c.l.b16 %v301
      %v877 = vunpack.c.l.b16 %v302
      %v878 = vunpack.c.l.b16 %v303
      %v879 = vunpack.c.l.b16 %v304
      %v880 = vunpack.c.l.b16 %v305
      %v881 = vunpack.c.l.b16 %v306
      %v882 = vunpack.c.l.b16 %v307
      %v883 = vunpack.c.l.b16 %v308
      %v884 = vunpack.c.l.b16 %v309
      %v885 = vunpack.c.l.b16 %v310
      %v886 = vunpack.c.l.b16 %v311
      %v887 = vunpack.c.l.b16 %v312
      %v888 = vunpack.c.l.b16 %v313
      %v889 = vunpack.c.l.b16 %v314
      %v890 = vunpack.c.l.b16 %v315
      %v891 = vunpack.c.l.b16 %v316
      %v892 = vunpack.c.l.b16 %v317
      %v893 = vunpack.c.l.b16 %v318
      %v894 = vunpack.c.l.b16 %v319
      %v895 = vunpack.c.l.b16 %v320
      %v896 = vunpack.c.l.b16 %v321
      %v897 = vunpack.c.l.b16 %v322
      %v898 = vunpack.c.l.b16 %v323
      %v899 = vunpack.c.l.b16 %v324
      %v900 = vunpack.c.l.b16 %v325
      %v901 = vunpack.c.l.b16 %v326
      %v902 = vunpack.c.l.b16 %v327
      %v903 = vunpack.c.l.b16 %v328
      %v904 = vunpack.c.l.b16 %v329
      %v905 = vunpack.c.l.b16 %v330
      %v906 = vunpack.c.l.b16 %v331
      %v907 = vunpack.c.l.b16 %v332
      %v908 = vunpack.c.l.b16 %v333
      %v909 = vunpack.c.l.b16 %v334
      %v910 = vunpack.c.l.b16 %v335
      %v911 = vunpack.c.l.b16 %v336
      %v912 = vunpack.c.l.b16 %v337
      %v913 = vunpack.c.l.b16 %v338
      %v914 = vunpack.c.l.b16 %v339
      %v915 = vunpack.c.l.b16 %v340
      %v916 = vunpack.c.l.b16 %v341
      %v917 = vunpack.c.l.b16 %v342
      %v918 = vunpack.c.l.b16 %v343
      %v919 = vunpack.c.l.b16 %v344
      %v920 = vunpack.c.l.b16 %v345
      %v921 = vunpack.c.l.b16 %v346
      %v922 = vunpack.c.l.b16 %v347
      %v923 = vunpack.c.l.b16 %v348
      %v924 = vunpack.c.l.b16 %v349
      %v925 = vunpack.c.l.b16 %v350
      %v926 = vunpack.c.l.b16 %v351
      %v927 = vunpack.c.l.b16 %v352
      %v928 = vunpack.c.l.b16 %v353
      %v929 = vunpack.c.l.b16 %v354
      %v930 = vunpack.c.l.b16 %v355
      %v931 = vunpack.c.l.b16 %v356
      %v932 = vunpack.c.l.b16 %v357
      %v933 = vunpack.c.l.b16 %v358
      %v934 = vunpack.c.l.b16 %v359
      %v935 = vunpack.c.l.b16 %v360
      %v936 = vunpack.c.l.b16 %v361
      %v937 = vunpack.c.l.b16 %v362
      %v938 = vunpack.c.l.b16 %v363
      %v939 = vunpack.c.l.b16 %v364
      %v940 = vunpack.c.l.b16 %v365
      %v941 = vunpack.c.l.b16 %v366
      %v942 = vunpack.c.l.b16 %v367
      %v943 = vunpack.c.l.b16 %v368
      %v944 = vunpack.c.l.b16 %v369
      %v945 = vunpack.c.l.b16 %v370
      %v946 = vunpack.c.l.b16 %v371
      %v947 = vunpack.c.l.b16 %v372
      %v948 = vunpack.c.l.b16 %v373
      %v949 = vunpack.c.l.b16 %v374
      %v950 = vunpack.c.l.b16 %v375
      %v951 = vunpack.c.l.b16 %v376
      %v952 = vunpack.c.l.b16 %v377
      %v953 = vunpack.c.l.b16 %v378
      %v954 = vunpack.c.l.b16 %v379
      %v955 = vunpack.c.l.b16 %v380
      %v956 = vunpack.c.l.b16 %v381
      %v957 = vunpack.c.l.b16 %v382
      %v958 = vunpack.c.l.b16 %v383
      %v959 = vunpack.c.l.b16 %v384
      %v960 = vunpack.c.l.b16 %v385
      %v961 = vunpack.c.l.b16 %v386
      %v962 = vunpack.c.l.b16 %v387
      %v963 = vunpack.c.l.b16 %v388
      %v964 = vunpack.c.l.b16 %v389
      %v965 = vunpack.c.l.b16 %v390
      %v966 = vunpack.c.l.b16 %v391
      %v967 = vunpack.c.l.b16 %v392
      %v968 = vunpack.c.l.b16 %v393
      %v969 = vunpack.c.l.b16 %v394
      %v970 = vunpack.c.l.b16 %v395
      %v971 = vunpack.c.l.b16 %v396
      %v972 = vunpack.c.l.b16 %v397
      %v973 = vunpack.c.l.b16 %v398
      %v974 = vunpack.c.l.b16 %v399
      %v975 = vunpack.c.l.b16 %v400
      %v976 = vunpack.c.l.b16 %v401
      %v977 = vunpack.c.l.b16 %v402
      %v978 = vunpack.c.l.b16 %v403
      %v979 = vunpack.c.l.b16 %v404
      %v980 = vunpack.c.l.b16 %v405
      %v981 = vunpack.c.l.b16 %v406
      %v982 = vunpack.c.l.b16 %v407
      %v983 = vunpack.c.l.b16 %v408
      %v984 = vunpack.c.l.b16 %v409
      %v985 = vunpack.c.l.b16 %v410
      %v986 = vunpack.c.l.b16 %v411
      %v987 = vunpack.c.l.b16 %v412
      %v988 = vunpack.c.l.b16 %v413
      %v989 = vunpack.c.l.b16 %v414
      %v990 = vunpack.c.l.b16 %v415
      %v991 = vunpack.c.l.b16 %v416
      %v992 = vunpack.c.l.b16 %v417
      %v993 = vunpack.c.l.b16 %v418
      %v994 = vunpack.c.l.b16 %v419
      %v995 = vunpack.c.l.b16 %v420
      %v996 = vunpack.c.l.b16 %v421
      %v997 = vunpack.c.l.b16 %v422
      %v998 = vunpack.c.l.b16 %v423
      %v999 = vunpack.c.l.b16 %v424
      %v1000 = vunpack.c.l.b16 %v425
      %v1001 = vunpack.c.l.b16 %v426
      %v1002 = vunpack.c.l.b16 %v427
      %v1003 = vunpack.c.l.b16 %v428
      %v1004 = vunpack.c.l.b16 %v429
      %v1005 = vunpack.c.l.b16 %v430
      %v1006 = vunpack.c.l.b16 %v431
      %v1007 = vunpack.c.l.b16 %v432
      %v1008 = vunpack.c.l.b16 %v433
      %v1009 = vpack.c.b16 %v754, %v753
      %v1010 = vpack.c.b16 %v756, %v755
      %v1011 = vpack.c.b16 %v758, %v757
      %v1012 = vpack.c.b16 %v760, %v759
      %v1013 = vpack.c.b16 %v762, %v761
      %v1014 = vpack.c.b16 %v764, %v763
      %v1015 = vpack.c.b16 %v766, %v765
      %v1016 = vpack.c.b16 %v768, %v767
      %v1017 = vpack.c.b16 %v770, %v769
      %v1018 = vpack.c.b16 %v772, %v771
      %v1019 = vpack.c.b16 %v774, %v773
      %v1020 = vpack.c.b16 %v776, %v775
      %v1021 = vpack.c.b16 %v778, %v777
      %v1022 = vpack.c.b16 %v780, %v779
      %v1023 = vpack.c.b16 %v782, %v781
      %v1024 = vpack.c.b16 %v784, %v783
      %v1025 = vpack.c.b16 %v786, %v785
      %v1026 = vpack.c.b16 %v788, %v787
      %v1027 = vpack.c.b16 %v790, %v789
      %v1028 = vpack.c.b16 %v792, %v791
      %v1029 = vpack.c.b16 %v794, %v793
      %v1030 = vpack.c.b16 %v796, %v795
      %v1031 = vpack.c.b16 %v798, %v797
      %v1032 = vpack.c.b16 %v800, %v799
      %v1033 = vpack.c.b16 %v802, %v801
      %v1034 = vpack.c.b16 %v804, %v803
      %v1035 = vpack.c.b16 %v806, %v805
      %v1036 = vpack.c.b16 %v808, %v807
      %v1037 = vpack.c.b16 %v810, %v809
      %v1038 = vpack.c.b16 %v812, %v811
      %v1039 = vpack.c.b16 %v814, %v813
      %v1040 = vpack.c.b16 %v816, %v815
      %v1041 = vpack.c.b16 %v818, %v817
      %v1042 = vpack.c.b16 %v820, %v819
      %v1043 = vpack.c.b16 %v822, %v821
      %v1044 = vpack.c.b16 %v824, %v823
      %v1045 = vpack.c.b16 %v826, %v825
      %v1046 = vpack.c.b16 %v828, %v827
      %v1047 = vpack.c.b16 %v830, %v829
      %v1048 = vpack.c.b16 %v832, %v831
      %v1049 = vpack.c.b16 %v834, %v833
      %v1050 = vpack.c.b16 %v836, %v835
      %v1051 = vpack.c.b16 %v838, %v837
      %v1052 = vpack.c.b16 %v840, %v839
      %v1053 = vpack.c.b16 %v842, %v841
      %v1054 = vpack.c.b16 %v844, %v843
      %v1055 = vpack.c.b16 %v846, %v845
      %v1056 = vpack.c.b16 %v848, %v847
      %v1057 = vpack.c.b16 %v850, %v849
      %v1058 = vpack.c.b16 %v852, %v851
      %v1059 = vpack.c.b16 %v854, %v853
      %v1060 = vpack.c.b16 %v856, %v855
      %v1061 = vpack.c.b16 %v858, %v857
      %v1062 = vpack.c.b16 %v860, %v859
      %v1063 = vpack.c.b16 %v862, %v861
      %v1064 = vpack.c.b16 %v864, %v863
      %v1065 = vpack.c.b16 %v866, %v865
      %v1066 = vpack.c.b16 %v868, %v867
      %v1067 = vpack.c.b16 %v870, %v869
      %v1068 = vpack.c.b16 %v872, %v871
      %v1069 = vpack.c.b16 %v874, %v873
      %v1070 = vpack.c.b16 %v876, %v875
      %v1071 = vpack.c.b16 %v878, %v877
      %v1072 = vpack.c.b16 %v880, %v879
      %v1073 = vpack.c.b16 %v882, %v881
      %v1074 = vpack.c.b16 %v884, %v883
      %v1075 = vpack.c.b16 %v886, %v885
      %v1076 = vpack.c.b16 %v888, %v887
      %v1077 = vpack.c.b16 %v890, %v889
      %v1078 = vpack.c.b16 %v892, %v891
      %v1079 = vpack.c.b16 %v894, %v893
      %v1080 = vpack.c.b16 %v896, %v895
      %v1081 = vpack.c.b16 %v898, %v897
      %v1082 = vpack.c.b16 %v900, %v899
      %v1083 = vpack.c.b16 %v902, %v901
      %v1084 = vpack.c.b16 %v904, %v903
      %v1085 = vpack.c.b16 %v906, %v905
      %v1086 = vpack.c.b16 %v908, %v907
      %v1087 = vpack.c.b16 %v910, %v909
      %v1088 = vpack.c.b16 %v912, %v911
      %v1089 = vpack.c.b16 %v914, %v913
      %v1090 = vpack.c.b16 %v916, %v915
      %v1091 = vpack.c.b16 %v918, %v917
      %v1092 = vpack.c.b16 %v920, %v919
      %v1093 = vpack.c.b16 %v922, %v921
      %v1094 = vpack.c.b16 %v924, %v923
      %v1095 = vpack.c.b16 %v926, %v925
      %v1096 = vpack.c.b16 %v928, %v927
      %v1097 = vpack.c.b16 %v930, %v929
      %v1098 = vpack.c.b16 %v932, %v931
      %v1099 = vpack.c.b16 %v934, %v933
      %v1100 = vpack.c.b16 %v936, %v935
      %v1101 = vpack.c.b16 %v938, %v937
      %v1102 = vpack.c.b16 %v940, %v939
      %v1103 = vpack.c.b16 %v942, %v941
      %v1104 = vpack.c.b16 %v944, %v943
      %v1105 = vpack.c.b16 %v946, %v945
      %v1106 = vpack.c.b16 %v948, %v947
      %v1107 = vpack.c.b16 %v950, %v949
      %v1108 = vpack.c.b16 %v952, %v951
      %v1109 = vpack.c.b16 %v954, %v953
      %v1110 = vpack.c.b16 %v956, %v955
      %v1111 = vpack.c.b16 %v958, %v957
      %v1112 = vpack.c.b16 %v960, %v959
      %v1113 = vpack.c.b16 %v962, %v961
      %v1114 = vpack.c.b16 %v964, %v963
      %v1115 = vpack.c.b16 %v966, %v965
      %v1116 = vpack.c.b16 %v968, %v967
      %v1117 = vpack.c.b16 %v970, %v969
      %v1118 = vpack.c.b16 %v972, %v971
      %v1119 = vpack.c.b16 %v974, %v973
      %v1120 = vpack.c.b16 %v976, %v975
      %v1121 = vpack.c.b16 %v978, %v977
      %v1122 = vpack.c.b16 %v980, %v979
      %v1123 = vpack.c.b16 %v982, %v981
      %v1124 = vpack.c.b16 %v984, %v983
      %v1125 = vpack.c.b16 %v986, %v985
      %v1126 = vpack.c.b16 %v988, %v987
      %v1127 = vpack.c.b16 %v990, %v989
      %v1128 = vpack.c.b16 %v992, %v991
      %v1129 = vpack.c.b16 %v994, %v993
      %v1130 = vpack.c.b16 %v996, %v995
      %v1131 = vpack.c.b16 %v998, %v997
      %v1132 = vpack.c.b16 %v1000, %v999
      %v1133 = vpack.c.b16 %v1002, %v1001
      %v1134 = vpack.c.b16 %v1004, %v1003
      %v1135 = vpack.c.b16 %v1006, %v1005
      %v1136 = vpack.c.b16 %v1008, %v1007
      %1265 = vmatprep.subr.bf16.mxu0 0
      %1266 = vmatpush1.bf16.msra.mxu0 %v1009
      %1267 = vmatprep.subr.bf16.mxu0 0
      %1268 = vmatpush1.bf16.msra.mxu0 %v1010
      %1269 = vmatprep.subr.bf16.mxu0 0
      %1270 = vmatpush1.bf16.msra.mxu0 %v1011
      %1271 = vmatprep.subr.bf16.mxu0 0
      %1272 = vmatpush1.bf16.msra.mxu0 %v1012
      %1273 = vmatprep.subr.bf16.mxu0 0
      %1274 = vmatpush1.bf16.msra.mxu0 %v1013
      %1275 = vmatprep.subr.bf16.mxu0 0
      %1276 = vmatpush1.bf16.msra.mxu0 %v1014
      %1277 = vmatprep.subr.bf16.mxu0 0
      %1278 = vmatpush1.bf16.msra.mxu0 %v1015
      %1279 = vmatprep.subr.bf16.mxu0 0
      %1280 = vmatpush1.bf16.msra.mxu0 %v1016
      %1281 = vmatprep.subr.bf16.mxu0 0
      %1282 = vmatpush1.bf16.msra.mxu0 %v1017
      %1283 = vmatprep.subr.bf16.mxu0 0
      %1284 = vmatpush1.bf16.msra.mxu0 %v1018
      %1285 = vmatprep.subr.bf16.mxu0 0
      %1286 = vmatpush1.bf16.msra.mxu0 %v1019
      %1287 = vmatprep.subr.bf16.mxu0 0
      %1288 = vmatpush1.bf16.msra.mxu0 %v1020
      %1289 = vmatprep.subr.bf16.mxu0 0
      %1290 = vmatpush1.bf16.msra.mxu0 %v1021
      %1291 = vmatprep.subr.bf16.mxu0 0
      %1292 = vmatpush1.bf16.msra.mxu0 %v1022
      %1293 = vmatprep.subr.bf16.mxu0 0
      %1294 = vmatpush1.bf16.msra.mxu0 %v1023
      %1295 = vmatprep.subr.bf16.mxu0 0
      %1296 = vmatpush1.bf16.msra.mxu0 %v1024
      %1297 = vmatprep.mubr.bf16.mxu0 %v466
      %1298 = vmatmul.mubr.bf16.gmra.mrb[0].mxu0 %v465
      %v1299 = vpop.f32.mrb[0].mxu0
      %v1300 = vadd.f32 %v439, %v1299
      %v1301 = vpop.f32.mrb[0].mxu0
      %v1302 = vpop.f32.mrb[0].mxu0
      %v1303 = vpop.f32.mrb[0].mxu0
      %1304 = vdwg.mxu0
      %1305 = vmatprep.subr.bf16.mxu0 0
      %1306 = vmatpush1.bf16.msra.mxu0 %v1025
      %1307 = vmatprep.subr.bf16.mxu0 0
      %1308 = vmatpush1.bf16.msra.mxu0 %v1026
      %1309 = vmatprep.subr.bf16.mxu0 0
      %1310 = vmatpush1.bf16.msra.mxu0 %v1027
      %1311 = vmatprep.subr.bf16.mxu0 0
      %1312 = vmatpush1.bf16.msra.mxu0 %v1028
      %1313 = vmatprep.subr.bf16.mxu0 0
      %1314 = vmatpush1.bf16.msra.mxu0 %v1029
      %1315 = vmatprep.subr.bf16.mxu0 0
      %1316 = vmatpush1.bf16.msra.mxu0 %v1030
      %1317 = vmatprep.subr.bf16.mxu0 0
      %1318 = vmatpush1.bf16.msra.mxu0 %v1031
      %1319 = vmatprep.subr.bf16.mxu0 0
      %1320 = vmatpush1.bf16.msra.mxu0 %v1032
      %1321 = vmatprep.subr.bf16.mxu0 0
      %1322 = vmatpush1.bf16.msra.mxu0 %v1033
      %1323 = vmatprep.subr.bf16.mxu0 0
      %1324 = vmatpush1.bf16.msra.mxu0 %v1034
      %1325 = vmatprep.subr.bf16.mxu0 0
      %1326 = vmatpush1.bf16.msra.mxu0 %v1035
      %1327 = vmatprep.subr.bf16.mxu0 0
      %1328 = vmatpush1.bf16.msra.mxu0 %v1036
      %1329 = vmatprep.subr.bf16.mxu0 0
      %1330 = vmatpush1.bf16.msra.mxu0 %v1037
      %1331 = vmatprep.subr.bf16.mxu0 0
      %1332 = vmatpush1.bf16.msra.mxu0 %v1038
      %1333 = vmatprep.subr.bf16.mxu0 0
      %1334 = vmatpush1.bf16.msra.mxu0 %v1039
      %1335 = vmatprep.subr.bf16.mxu0 0
      %1336 = vmatpush1.bf16.msra.mxu0 %v1040
      %1337 = vmatprep.mubr.bf16.mxu0 %v468
      %1338 = vmatmul.mubr.bf16.gmra.mrb[0].mxu0 %v467
      %v1339 = vpop.f32.mrb[0].mxu0
      %v1340 = vadd.f32 %v1300, %v1339
      %v1341 = vpop.f32.mrb[0].mxu0
      %v1342 = vpop.f32.mrb[0].mxu0
      %v1343 = vpop.f32.mrb[0].mxu0
      %1344 = vdwg.mxu0
      %1345 = vmatprep.subr.bf16.mxu0 0
      %1346 = vmatpush1.bf16.msra.mxu0 %v1041
      %1347 = vmatprep.subr.bf16.mxu0 0
      %1348 = vmatpush1.bf16.msra.mxu0 %v1042
      %1349 = vmatprep.subr.bf16.mxu0 0
      %1350 = vmatpush1.bf16.msra.mxu0 %v1043
      %1351 = vmatprep.subr.bf16.mxu0 0
      %1352 = vmatpush1.bf16.msra.mxu0 %v1044
      %1353 = vmatprep.subr.bf16.mxu0 0
      %1354 = vmatpush1.bf16.msra.mxu0 %v1045
      %1355 = vmatprep.subr.bf16.mxu0 0
      %1356 = vmatpush1.bf16.msra.mxu0 %v1046
      %1357 = vmatprep.subr.bf16.mxu0 0
      %1358 = vmatpush1.bf16.msra.mxu0 %v1047
      %1359 = vmatprep.subr.bf16.mxu0 0
      %1360 = vmatpush1.bf16.msra.mxu0 %v1048
      %1361 = vmatprep.subr.bf16.mxu0 0
      %1362 = vmatpush1.bf16.msra.mxu0 %v1049
      %1363 = vmatprep.subr.bf16.mxu0 0
      %1364 = vmatpush1.bf16.msra.mxu0 %v1050
      %1365 = vmatprep.subr.bf16.mxu0 0
      %1366 = vmatpush1.bf16.msra.mxu0 %v1051
      %1367 = vmatprep.subr.bf16.mxu0 0
      %1368 = vmatpush1.bf16.msra.mxu0 %v1052
      %1369 = vmatprep.subr.bf16.mxu0 0
      %1370 = vmatpush1.bf16.msra.mxu0 %v1053
      %1371 = vmatprep.subr.bf16.mxu0 0
      %1372 = vmatpush1.bf16.msra.mxu0 %v1054
      %1373 = vmatprep.subr.bf16.mxu0 0
      %1374 = vmatpush1.bf16.msra.mxu0 %v1055
      %1375 = vmatprep.subr.bf16.mxu0 0
      %1376 = vmatpush1.bf16.msra.mxu0 %v1056
      %1377 = vmatprep.mubr.bf16.mxu0 %v470
      %1378 = vmatmul.mubr.bf16.gmra.mrb[0].mxu0 %v469
      %v1379 = vpop.f32.mrb[0].mxu0
      %v1380 = vadd.f32 %v1340, %v1379
      %v1381 = vpop.f32.mrb[0].mxu0
      %v1382 = vpop.f32.mrb[0].mxu0
      %v1383 = vpop.f32.mrb[0].mxu0
      %1384 = vdwg.mxu0
      %1385 = vmatprep.subr.bf16.mxu0 0
      %1386 = vmatpush1.bf16.msra.mxu0 %v1057
      %1387 = vmatprep.subr.bf16.mxu0 0
      %1388 = vmatpush1.bf16.msra.mxu0 %v1058
      %1389 = vmatprep.subr.bf16.mxu0 0
      %1390 = vmatpush1.bf16.msra.mxu0 %v1059
      %1391 = vmatprep.subr.bf16.mxu0 0
      %1392 = vmatpush1.bf16.msra.mxu0 %v1060
      %1393 = vmatprep.subr.bf16.mxu0 0
      %1394 = vmatpush1.bf16.msra.mxu0 %v1061
      %1395 = vmatprep.subr.bf16.mxu0 0
      %1396 = vmatpush1.bf16.msra.mxu0 %v1062
      %1397 = vmatprep.subr.bf16.mxu0 0
      %1398 = vmatpush1.bf16.msra.mxu0 %v1063
      %1399 = vmatprep.subr.bf16.mxu0 0
      %1400 = vmatpush1.bf16.msra.mxu0 %v1064
      %1401 = vmatprep.subr.bf16.mxu0 0
      %1402 = vmatpush1.bf16.msra.mxu0 %v1065
      %1403 = vmatprep.subr.bf16.mxu0 0
      %1404 = vmatpush1.bf16.msra.mxu0 %v1066
      %1405 = vmatprep.subr.bf16.mxu0 0
      %1406 = vmatpush1.bf16.msra.mxu0 %v1067
      %1407 = vmatprep.subr.bf16.mxu0 0
      %1408 = vmatpush1.bf16.msra.mxu0 %v1068
      %1409 = vmatprep.subr.bf16.mxu0 0
      %1410 = vmatpush1.bf16.msra.mxu0 %v1069
      %1411 = vmatprep.subr.bf16.mxu0 0
      %1412 = vmatpush1.bf16.msra.mxu0 %v1070
      %1413 = vmatprep.subr.bf16.mxu0 0
      %1414 = vmatpush1.bf16.msra.mxu0 %v1071
      %1415 = vmatprep.subr.bf16.mxu0 0
      %1416 = vmatpush1.bf16.msra.mxu0 %v1072
      %1417 = vmatprep.mubr.bf16.mxu0 %v472
      %1418 = vmatmul.mubr.bf16.gmra.mrb[0].mxu0 %v471
      %v1419 = vpop.f32.mrb[0].mxu0
      %v1420 = vadd.f32 %v1380, %v1419
      %v1421 = vpop.f32.mrb[0].mxu0
      %v1422 = vpop.f32.mrb[0].mxu0
      %v1423 = vpop.f32.mrb[0].mxu0
      %1424 = vdwg.mxu0
      %1425 = vmatprep.subr.bf16.mxu0 0
      %1426 = vmatpush1.bf16.msra.mxu0 %v1073
      %1427 = vmatprep.subr.bf16.mxu0 0
      %1428 = vmatpush1.bf16.msra.mxu0 %v1074
      %1429 = vmatprep.subr.bf16.mxu0 0
      %1430 = vmatpush1.bf16.msra.mxu0 %v1075
      %1431 = vmatprep.subr.bf16.mxu0 0
      %1432 = vmatpush1.bf16.msra.mxu0 %v1076
      %1433 = vmatprep.subr.bf16.mxu0 0
      %1434 = vmatpush1.bf16.msra.mxu0 %v1077
      %1435 = vmatprep.subr.bf16.mxu0 0
      %1436 = vmatpush1.bf16.msra.mxu0 %v1078
      %1437 = vmatprep.subr.bf16.mxu0 0
      %1438 = vmatpush1.bf16.msra.mxu0 %v1079
      %1439 = vmatprep.subr.bf16.mxu0 0
      %1440 = vmatpush1.bf16.msra.mxu0 %v1080
      %1441 = vmatprep.subr.bf16.mxu0 0
      %1442 = vmatpush1.bf16.msra.mxu0 %v1081
      %1443 = vmatprep.subr.bf16.mxu0 0
      %1444 = vmatpush1.bf16.msra.mxu0 %v1082
      %1445 = vmatprep.subr.bf16.mxu0 0
      %1446 = vmatpush1.bf16.msra.mxu0 %v1083
      %1447 = vmatprep.subr.bf16.mxu0 0
      %1448 = vmatpush1.bf16.msra.mxu0 %v1084
      %1449 = vmatprep.subr.bf16.mxu0 0
      %1450 = vmatpush1.bf16.msra.mxu0 %v1085
      %1451 = vmatprep.subr.bf16.mxu0 0
      %1452 = vmatpush1.bf16.msra.mxu0 %v1086
      %1453 = vmatprep.subr.bf16.mxu0 0
      %1454 = vmatpush1.bf16.msra.mxu0 %v1087
      %1455 = vmatprep.subr.bf16.mxu0 0
      %1456 = vmatpush1.bf16.msra.mxu0 %v1088
      %1457 = vmatprep.mubr.bf16.mxu0 %v474
      %1458 = vmatmul.mubr.bf16.gmra.mrb[0].mxu0 %v473
      %v1459 = vpop.f32.mrb[0].mxu0
      %v1460 = vadd.f32 %v1420, %v1459
      %v1461 = vpop.f32.mrb[0].mxu0
      %v1462 = vpop.f32.mrb[0].mxu0
      %v1463 = vpop.f32.mrb[0].mxu0
      %1464 = vdwg.mxu0
      %1465 = vmatprep.subr.bf16.mxu0 0
      %1466 = vmatpush1.bf16.msra.mxu0 %v1089
      %1467 = vmatprep.subr.bf16.mxu0 0
      %1468 = vmatpush1.bf16.msra.mxu0 %v1090
      %1469 = vmatprep.subr.bf16.mxu0 0
      %1470 = vmatpush1.bf16.msra.mxu0 %v1091
      %1471 = vmatprep.subr.bf16.mxu0 0
      %1472 = vmatpush1.bf16.msra.mxu0 %v1092
      %1473 = vmatprep.subr.bf16.mxu0 0
      %1474 = vmatpush1.bf16.msra.mxu0 %v1093
      %1475 = vmatprep.subr.bf16.mxu0 0
      %1476 = vmatpush1.bf16.msra.mxu0 %v1094
      %1477 = vmatprep.subr.bf16.mxu0 0
      %1478 = vmatpush1.bf16.msra.mxu0 %v1095
      %1479 = vmatprep.subr.bf16.mxu0 0
      %1480 = vmatpush1.bf16.msra.mxu0 %v1096
      %1481 = vmatprep.subr.bf16.mxu0 0
      %1482 = vmatpush1.bf16.msra.mxu0 %v1097
      %1483 = vmatprep.subr.bf16.mxu0 0
      %1484 = vmatpush1.bf16.msra.mxu0 %v1098
      %1485 = vmatprep.subr.bf16.mxu0 0
      %1486 = vmatpush1.bf16.msra.mxu0 %v1099
      %1487 = vmatprep.subr.bf16.mxu0 0
      %1488 = vmatpush1.bf16.msra.mxu0 %v1100
      %1489 = vmatprep.subr.bf16.mxu0 0
      %1490 = vmatpush1.bf16.msra.mxu0 %v1101
      %1491 = vmatprep.subr.bf16.mxu0 0
      %1492 = vmatpush1.bf16.msra.mxu0 %v1102
      %1493 = vmatprep.subr.bf16.mxu0 0
      %1494 = vmatpush1.bf16.msra.mxu0 %v1103
      %1495 = vmatprep.subr.bf16.mxu0 0
      %1496 = vmatpush1.bf16.msra.mxu0 %v1104
      %1497 = vmatprep.mubr.bf16.mxu0 %v476
      %1498 = vmatmul.mubr.bf16.gmra.mrb[0].mxu0 %v475
      %v1499 = vpop.f32.mrb[0].mxu0
      %v1500 = vadd.f32 %v1460, %v1499
      %v1501 = vpop.f32.mrb[0].mxu0
      %v1502 = vpop.f32.mrb[0].mxu0
      %v1503 = vpop.f32.mrb[0].mxu0
      %1504 = vdwg.mxu0
      %1505 = vmatprep.subr.bf16.mxu0 0
      %1506 = vmatpush1.bf16.msra.mxu0 %v1105
      %1507 = vmatprep.subr.bf16.mxu0 0
      %1508 = vmatpush1.bf16.msra.mxu0 %v1106
      %1509 = vmatprep.subr.bf16.mxu0 0
      %1510 = vmatpush1.bf16.msra.mxu0 %v1107
      %1511 = vmatprep.subr.bf16.mxu0 0
      %1512 = vmatpush1.bf16.msra.mxu0 %v1108
      %1513 = vmatprep.subr.bf16.mxu0 0
      %1514 = vmatpush1.bf16.msra.mxu0 %v1109
      %1515 = vmatprep.subr.bf16.mxu0 0
      %1516 = vmatpush1.bf16.msra.mxu0 %v1110
      %1517 = vmatprep.subr.bf16.mxu0 0
      %1518 = vmatpush1.bf16.msra.mxu0 %v1111
      %1519 = vmatprep.subr.bf16.mxu0 0
      %1520 = vmatpush1.bf16.msra.mxu0 %v1112
      %1521 = vmatprep.subr.bf16.mxu0 0
      %1522 = vmatpush1.bf16.msra.mxu0 %v1113
      %1523 = vmatprep.subr.bf16.mxu0 0
      %1524 = vmatpush1.bf16.msra.mxu0 %v1114
      %1525 = vmatprep.subr.bf16.mxu0 0
      %1526 = vmatpush1.bf16.msra.mxu0 %v1115
      %1527 = vmatprep.subr.bf16.mxu0 0
      %1528 = vmatpush1.bf16.msra.mxu0 %v1116
      %1529 = vmatprep.subr.bf16.mxu0 0
      %1530 = vmatpush1.bf16.msra.mxu0 %v1117
      %1531 = vmatprep.subr.bf16.mxu0 0
      %1532 = vmatpush1.bf16.msra.mxu0 %v1118
      %1533 = vmatprep.subr.bf16.mxu0 0
      %1534 = vmatpush1.bf16.msra.mxu0 %v1119
      %1535 = vmatprep.subr.bf16.mxu0 0
      %1536 = vmatpush1.bf16.msra.mxu0 %v1120
      %1537 = vmatprep.mubr.bf16.mxu0 %v478
      %1538 = vmatmul.mubr.bf16.gmra.mrb[0].mxu0 %v477
      %v1539 = vpop.f32.mrb[0].mxu0
      %v1540 = vadd.f32 %v1500, %v1539
      %v1541 = vpop.f32.mrb[0].mxu0
      %v1542 = vpop.f32.mrb[0].mxu0
      %v1543 = vpop.f32.mrb[0].mxu0
      %1544 = vdwg.mxu0
      %1545 = vmatprep.subr.bf16.mxu0 0
      %1546 = vmatpush1.bf16.msra.mxu0 %v1121
      %1547 = vmatprep.subr.bf16.mxu0 0
      %1548 = vmatpush1.bf16.msra.mxu0 %v1122
      %1549 = vmatprep.subr.bf16.mxu0 0
      %1550 = vmatpush1.bf16.msra.mxu0 %v1123
      %1551 = vmatprep.subr.bf16.mxu0 0
      %1552 = vmatpush1.bf16.msra.mxu0 %v1124
      %1553 = vmatprep.subr.bf16.mxu0 0
      %1554 = vmatpush1.bf16.msra.mxu0 %v1125
      %1555 = vmatprep.subr.bf16.mxu0 0
      %1556 = vmatpush1.bf16.msra.mxu0 %v1126
      %1557 = vmatprep.subr.bf16.mxu0 0
      %1558 = vmatpush1.bf16.msra.mxu0 %v1127
      %1559 = vmatprep.subr.bf16.mxu0 0
      %1560 = vmatpush1.bf16.msra.mxu0 %v1128
      %1561 = vmatprep.subr.bf16.mxu0 0
      %1562 = vmatpush1.bf16.msra.mxu0 %v1129
      %1563 = vmatprep.subr.bf16.mxu0 0
      %1564 = vmatpush1.bf16.msra.mxu0 %v1130
      %1565 = vmatprep.subr.bf16.mxu0 0
      %1566 = vmatpush1.bf16.msra.mxu0 %v1131
      %1567 = vmatprep.subr.bf16.mxu0 0
      %1568 = vmatpush1.bf16.msra.mxu0 %v1132
      %1569 = vmatprep.subr.bf16.mxu0 0
      %1570 = vmatpush1.bf16.msra.mxu0 %v1133
      %1571 = vmatprep.subr.bf16.mxu0 0
      %1572 = vmatpush1.bf16.msra.mxu0 %v1134
      %1573 = vmatprep.subr.bf16.mxu0 0
      %1574 = vmatpush1.bf16.msra.mxu0 %v1135
      %1575 = vmatprep.subr.bf16.mxu0 0
      %1576 = vmatpush1.bf16.msra.mxu0 %v1136
      %1577 = vmatprep.mubr.bf16.mxu0 %v480
      %1578 = vmatmul.mubr.bf16.gmra.mrb[0].mxu0 %v479
      %v1579 = vpop.f32.mrb[0].mxu0
      %v1580 = vadd.f32 %v1540, %v1579
      %v1581 = vpop.f32.mrb[0].mxu0
      %v1582 = vpop.f32.mrb[0].mxu0
      %v1583 = vpop.f32.mrb[0].mxu0
      %1584 = vdwg.mxu0
      %1585 = vst [vmem:[%s168] sm:$0xff] %v1580
      %p1586 = scmp.lt.s32.totalorder %s14, 1
      %s1587 = scalar_select %p1586, %s14, 1
      %s1588 = smul.addr %s1587, 8
      %s1589 = scalar_lea.vmem %s3, %s1588
      // Predicated region
      $region33: #{convnet_forward.1} parent=31 // pred_check
        %p1590 = pneg %p100
      $region34: #{convnet_forward.1} parent=31 // pred_check_branch
        %1592 = sbr.rel (%p1590) target = $region36
      $region35: #{convnet_forward.1} parent=31 // pred_region
        _
      $region36: #{convnet_forward.1} parent=31 // pred_fallthru
        _
    $region32: #{convnet_forward.1} parent=5 // pred_fallthru
      _
    %p1593 = scmp.le.s32.totalorder 2, %s9
    // Predicated region
    $region37: #{convnet_forward.1} parent=5 // pred_check
      %p1594 = pneg %p1593
    $region38: #{convnet_forward.1} parent=5 // pred_check_branch
      %1596 = sbr.rel (%p1594) target = $region40
    $region39: #{convnet_forward.1} parent=5 // pred_region
      %s1597 = ssub.s32 %s9, 2
      // Predicated region
      $region41: #{convnet_forward.1} parent=39 // pred_check
        %p1598 = pneg %p106
      $region42: #{convnet_forward.1} parent=39 // pred_check_branch
        %1600 = sbr.rel (%p1598) target = $region44
      $region43: #{convnet_forward.1} parent=39 // pred_region
        %p1601 = scmp.lt.s32.totalorder %s15, 1
        %s1602 = scalar_select %p1601, %s15, 1
        %s1603 = smul.addr %s1602, 8
        %s1604 = scalar_lea.vmem %s3, %s1603
      $region44: #{convnet_forward.1} parent=39 // pred_fallthru
        _
    $region40: #{convnet_forward.1} parent=5 // pred_fallthru
      _
  $region6: #{convnet_forward.1} parent=0 // loop_footer
    %s13 = sadd.s32 1, %s9
  $region7: #{convnet_forward.1} parent=0 // loop_footer_branch
    %8 = sbr.rel target = $region3
  $region8: #{convnet_forward.1} parent=0 // loop_exit
    _

</llo_original>
